<compile_context>
chip_gen: v7x
topology: tpu7x:2x2x1
jax: 0.10.0
libtpu: 0.0.40
codegen_flags: <defaults>
</compile_context>

<pallas_src>
import jax
import jax.numpy as jnp
from jax.experimental import pallas as pl
from jax.experimental.pallas import tpu as pltpu


def _masked_proj_nct_kernel(x_ref, m_ref, w_ref, b_ref, o_ref):
    """One (batch, Cout-tile, T-tile) block per grid step, NCT layout.

    x_ref: (1, Cin, tt)   input dtype (f32 or bf16)
    m_ref: (1, 1,  tt)    float32 (1.0 valid / 0.0 masked)
    w_ref: (ct,  Cin)     bfloat16
    b_ref: (ct,  1)       float32
    o_ref: (1, ct, tt)    out dtype
    """
    cin = x_ref.shape[1]
    if cin >= 16:
        # Normal path: single MXU matmul, f32 accumulation.
        x = x_ref[0]
        if x.dtype != jnp.bfloat16:
            x = x.astype(jnp.bfloat16)            # VPU cast, avoids a wrapper HBM pass
        y = jnp.dot(w_ref[...], x, preferred_element_type=jnp.float32)   # (ct, tt)
    else:
        # Tiny Cin (e.g. 4): MXU K-dim would be almost entirely padding ->
        # do Cin broadcast-FMAs on the VPU instead.
        x = x_ref[0].astype(jnp.float32)          # (Cin, tt)
        w = w_ref[...].astype(jnp.float32)        # (ct, Cin)
        y = w[:, 0:1] * x[0:1, :]
        for c in range(1, cin):
            y = y + w[:, c:c + 1] * x[c:c + 1, :]
    y = y + b_ref[...]                            # bias broadcast over T (lanes), f32
    y = y * m_ref[0]                              # mask broadcast over Cout (sublanes), f32
    o_ref[0] = y.astype(o_ref.dtype)


def masked_conv1x1_nct(x_nct, mask_b1t, weight_oc_ic, bias_col, *,
                       tile_t=1024, out_dtype=jnp.bfloat16):
    """Masked 1x1 conv in NCT layout.

    x_nct:        (B, Cin, T)  float32 or bfloat16 (no wrapper cast needed)
    mask_b1t:     (B, 1, T)    float32 (1.0 valid / 0.0 masked)
    weight_oc_ic: (Cout, Cin)  bfloat16
    bias_col:     (Cout, 1)    float32
    returns       (B, Cout, T) out_dtype
    """
    B, Cin, T = x_nct.shape
    Cout = weight_oc_ic.shape[0]
    x_bytes = jnp.dtype(x_nct.dtype).itemsize
    out_bytes = jnp.dtype(out_dtype).itemsize

    # --- T tile: biggest multiple of 128 whose double-buffered working set stays
    # under a cross-generation VMEM budget (~24 MiB; v7x has only 64 MiB physical).
    budget = 24 << 20
    tt = max(128, (int(tile_t) // 128) * 128)
    per_t = 2 * (max(Cin, 8) * x_bytes + max(Cout, 8) * out_bytes + 8 * 4)
    while tt > 128 and tt * per_t > budget:
        tt = max(128, (tt // 2) // 128 * 128)
    if T <= tt:
        tt = T                       # full-extent block: no boundary block at all
    n_t = pl.cdiv(T, tt)             # ragged tail handled in-grid (no pad / slice)

    # --- Cout tile: normally the whole Cout (weight/bias resident across the T axis).
    # If the (B, T) grid has a single point, split Cout so a v7x chip can spread the
    # work across both TensorCores.
    ct = Cout
    if B * n_t == 1 and Cout % 2 == 0 and (Cout // 2) % 16 == 0:
        ct = Cout // 2
    n_c = Cout // ct

    grid = (B, n_c, n_t)

    # Explicit VMEM budget (double-buffered blocks, sublane/lane padding included).
    est = 2 * (tt * max(Cin, 8) * x_bytes            # x block
               + tt * max(ct, 8) * out_bytes         # out block
               + tt * 8 * 4                          # mask block
               + Cin * max(ct, 16) * 2               # weight block (bf16)
               + 128 * max(ct, 8) * 4)               # bias block (f32, lane-padded)
    vmem_limit = int(min(max(2 * est, 32 << 20), 48 << 20))

    return pl.pallas_call(
        _masked_proj_nct_kernel,
        out_shape=jax.ShapeDtypeStruct((B, Cout, T), out_dtype),
        grid_spec=pltpu.PrefetchScalarGridSpec(
            num_scalar_prefetch=0,
            grid=grid,
            in_specs=[
                pl.BlockSpec((1, Cin, tt), lambda b, j, i: (b, 0, i)),
                pl.BlockSpec((1, 1, tt), lambda b, j, i: (b, 0, i)),
                pl.BlockSpec((ct, Cin), lambda b, j, i: (j, 0)),   # resident over T
                pl.BlockSpec((ct, 1), lambda b, j, i: (j, 0)),     # resident over T
            ],
            out_specs=pl.BlockSpec((1, ct, tt), lambda b, j, i: (b, j, i)),
        ),
        compiler_params=pltpu.CompilerParams(
            dimension_semantics=("parallel", "parallel", "parallel"),
            vmem_limit_bytes=vmem_limit),
    )(x_nct, mask_b1t, weight_oc_ic, bias_col)


class TextNetPallas:
    """JAX/Pallas port of TextNet: optional 1x1 masked conv projection, returns (x, mask).

    out_dtype defaults to bfloat16 (halves HBM writeback of this mem-bound op; downstream
    transformer blocks typically consume bf16).  Pass out_dtype=jnp.float32 to match the
    PyTorch f32 output exactly.
    """

    def __init__(self, in_dim, embd_dim, max_seq_len, key,
                 out_dtype=jnp.bfloat16, **kwargs):
        self.max_seq_len = max_seq_len
        self.in_dim = in_dim
        self.embd_dim = embd_dim
        self.out_dtype = out_dtype
        self.has_proj = in_dim != embd_dim
        if self.has_proj:
            # PyTorch Conv1d default: kaiming-uniform weight (fan_in = in_dim*k=in_dim),
            # bias zeroed by TextNet.__init_weights__.
            bound = 1.0 / float(in_dim) ** 0.5
            w = jax.random.uniform(key, (embd_dim, in_dim), jnp.float32, -bound, bound)
            # Weight stored bf16 (MXU-native).  Results differ slightly from an f32
            # PyTorch Conv1d; keep an f32 weight copy here if exact parity is required.
            self.weight = w.astype(jnp.bfloat16)
            self.bias = jnp.zeros((embd_dim, 1), jnp.float32)
        else:
            self.weight = None
            self.bias = None

    def __call__(self, x, mask):
        """
        Args:
            x:    (bs, c, t) float  -- PyTorch NCT layout (no transpose, no wrapper cast).
            mask: (bs, 1, t) bool   -- 1 for valid positions.
        Returns:
            (x_out, mask) with x_out: (bs, embd_dim, t) out_dtype if projected else x.
        """
        if not self.has_proj:
            return x, mask
        mask_f = mask.astype(jnp.float32)   # tiny (B,1,T) pass; x itself is untouched
        y = masked_conv1x1_nct(x, mask_f, self.weight, self.bias,
                               out_dtype=self.out_dtype)
        return y, mask


if __name__ == "__main__":
    key = jax.random.PRNGKey(0)
    k_x, k_w, k_b, k_x2, k_w2 = jax.random.split(key, 5)

    # ---- Test 1: module-shaped demo (tiny Cin -> VPU path), default bf16 output.
    bs, in_dim, embd_dim, t = 2, 4, 32, 16
    x = jax.random.normal(k_x, (bs, in_dim, t), jnp.float32)
    lengths = jnp.array([16, 10], dtype=jnp.int32)
    mask = jnp.arange(t)[None, None, :] < lengths[:, None, None]

    model = TextNetPallas(in_dim=in_dim, embd_dim=embd_dim, max_seq_len=t, key=k_w)
    y, mask_out = model(x, mask)
    y = jax.block_until_ready(y)

    w_f = model.weight.astype(jnp.float32)
    y_ref = jnp.einsum("oc,bct->bot", w_f, x) * mask.astype(jnp.float32)
    assert y.shape == (bs, embd_dim, t) and y.dtype == jnp.bfloat16
    assert mask_out.shape == (bs, 1, t)
    assert jnp.allclose(y.astype(jnp.float32), y_ref, atol=2e-2, rtol=2e-2)

    # Identity path (in_dim == embd_dim): no projection, x passed through untouched.
    ident = TextNetPallas(in_dim=embd_dim, embd_dim=embd_dim, max_seq_len=t, key=k_w)
    xi = jax.random.normal(k_x, (bs, embd_dim, t), jnp.float32)
    yi, _ = ident(xi, mask)
    assert yi is xi

    # ---- Test 2: MXU path, ragged T (boundary T-tile), nonzero bias, f32 output.
    B2, Cin2, Cout2, T2 = 2, 32, 64, 200
    x2 = jax.random.normal(k_x2, (B2, Cin2, T2), jnp.float32)
    lengths2 = jnp.array([200, 131], dtype=jnp.int32)
    mask2 = jnp.arange(T2)[None, None, :] < lengths2[:, None, None]
    w2 = (jax.random.normal(k_w2, (Cout2, Cin2), jnp.float32) * 0.1).astype(jnp.bfloat16)
    b2 = jax.random.normal(k_b, (Cout2, 1), jnp.float32) * 0.1

    y2 = masked_conv1x1_nct(x2, mask2.astype(jnp.float32), w2, b2,
                            tile_t=128, out_dtype=jnp.float32)
    y2 = jax.block_until_ready(y2)
    x2_bf = x2.astype(jnp.bfloat16).astype(jnp.float32)
    y2_ref = (jnp.einsum("oc,bct->bot", w2.astype(jnp.float32), x2_bf) + b2[None]) \
        * mask2.astype(jnp.float32)
    assert y2.shape == (B2, Cout2, T2)
    assert jnp.allclose(y2, y2_ref, atol=1e-3, rtol=1e-3)

    # ---- Test 3: single (B, T) grid point -> Cout split across two blocks (v7x 2-TC path).
    x3 = jax.random.normal(k_x, (1, Cin2, 64), jnp.float32)
    mask3 = jnp.ones((1, 1, 64), dtype=bool)
    y3 = masked_conv1x1_nct(x3, mask3.astype(jnp.float32), w2, b2,
                            out_dtype=jnp.float32)
    y3 = jax.block_until_ready(y3)
    y3_ref = jnp.einsum("oc,bct->bot", w2.astype(jnp.float32),
                        x3.astype(jnp.bfloat16).astype(jnp.float32)) + b2[None]
    assert jnp.allclose(y3, y3_ref, atol=1e-3, rtol=1e-3)

    print("KERNEL_OK")
</pallas_src>

<mosaic_0001>
module attributes {stable_mosaic.version = 11 : i64} {
  func.func @_masked_proj_nct_kernel(%arg0: i32, %arg1: i32, %arg2: i32, %arg3: memref<1x4x16xf32, #tpu.memory_space<vmem>>, %arg4: memref<1x1x16xf32, #tpu.memory_space<vmem>>, %arg5: memref<32x4xbf16, #tpu.memory_space<vmem>>, %arg6: memref<32x1xf32, #tpu.memory_space<vmem>>, %arg7: memref<1x32x16xbf16, #tpu.memory_space<vmem>>) attributes {dimension_semantics = [#tpu.dimension_semantics<parallel>, #tpu.dimension_semantics<parallel>, #tpu.dimension_semantics<parallel>], iteration_bounds = array<i64: 2, 1, 1>, scalar_prefetch = 0 : i64, scratch_operands = 0 : i64, tpu.core_type = #tpu.core_type<tc>, window_params = [{transform_indices = @transform_0, window_bounds = array<i64: 1, 4, 16>}, {transform_indices = @transform_1, window_bounds = array<i64: 1, 1, 16>}, {transform_indices = @transform_2, window_bounds = array<i64: 32, 4>}, {transform_indices = @transform_3, window_bounds = array<i64: 32, 1>}, {transform_indices = @transform_4, window_bounds = array<i64: 1, 32, 16>}]} {
    %c0 = arith.constant 0 : index
    %c0_0 = arith.constant 0 : index
    %c0_1 = arith.constant 0 : index
    %0 = vector.load %arg3[%c0, %c0_0, %c0_1] : memref<1x4x16xf32, #tpu.memory_space<vmem>>, vector<1x4x16xf32>
    %1 = vector.shape_cast %0 : vector<1x4x16xf32> to vector<4x16xf32>
    %c0_2 = arith.constant 0 : index
    %c0_3 = arith.constant 0 : index
    %2 = vector.load %arg5[%c0_2, %c0_3] : memref<32x4xbf16, #tpu.memory_space<vmem>>, vector<32x4xbf16>
    %3 = arith.extf %2 : vector<32x4xbf16> to vector<32x4xf32>
    %4 = vector.extract_strided_slice %3 {offsets = [0, 0], sizes = [32, 1], strides = [1, 1]} : vector<32x4xf32> to vector<32x1xf32>
    %5 = vector.extract_strided_slice %1 {offsets = [0, 0], sizes = [1, 16], strides = [1, 1]} : vector<4x16xf32> to vector<1x16xf32>
    %6 = vector.broadcast %4 : vector<32x1xf32> to vector<32x16xf32>
    %7 = vector.broadcast %5 : vector<1x16xf32> to vector<32x16xf32>
    %8 = arith.mulf %6, %7 : vector<32x16xf32>
    %9 = vector.extract_strided_slice %3 {offsets = [0, 1], sizes = [32, 1], strides = [1, 1]} : vector<32x4xf32> to vector<32x1xf32>
    %10 = vector.extract_strided_slice %1 {offsets = [1, 0], sizes = [1, 16], strides = [1, 1]} : vector<4x16xf32> to vector<1x16xf32>
    %11 = vector.broadcast %9 : vector<32x1xf32> to vector<32x16xf32>
    %12 = vector.broadcast %10 : vector<1x16xf32> to vector<32x16xf32>
    %13 = arith.mulf %11, %12 : vector<32x16xf32>
    %14 = arith.addf %8, %13 : vector<32x16xf32>
    %15 = vector.extract_strided_slice %3 {offsets = [0, 2], sizes = [32, 1], strides = [1, 1]} : vector<32x4xf32> to vector<32x1xf32>
    %16 = vector.extract_strided_slice %1 {offsets = [2, 0], sizes = [1, 16], strides = [1, 1]} : vector<4x16xf32> to vector<1x16xf32>
    %17 = vector.broadcast %15 : vector<32x1xf32> to vector<32x16xf32>
    %18 = vector.broadcast %16 : vector<1x16xf32> to vector<32x16xf32>
    %19 = arith.mulf %17, %18 : vector<32x16xf32>
    %20 = arith.addf %14, %19 : vector<32x16xf32>
    %21 = vector.extract_strided_slice %3 {offsets = [0, 3], sizes = [32, 1], strides = [1, 1]} : vector<32x4xf32> to vector<32x1xf32>
    %22 = vector.extract_strided_slice %1 {offsets = [3, 0], sizes = [1, 16], strides = [1, 1]} : vector<4x16xf32> to vector<1x16xf32>
    %23 = vector.broadcast %21 : vector<32x1xf32> to vector<32x16xf32>
    %24 = vector.broadcast %22 : vector<1x16xf32> to vector<32x16xf32>
    %25 = arith.mulf %23, %24 : vector<32x16xf32>
    %26 = arith.addf %20, %25 : vector<32x16xf32>
    %c0_4 = arith.constant 0 : index
    %c0_5 = arith.constant 0 : index
    %27 = vector.load %arg6[%c0_4, %c0_5] : memref<32x1xf32, #tpu.memory_space<vmem>>, vector<32x1xf32>
    %28 = vector.broadcast %27 : vector<32x1xf32> to vector<32x16xf32>
    %29 = arith.addf %26, %28 : vector<32x16xf32>
    %c0_6 = arith.constant 0 : index
    %c0_7 = arith.constant 0 : index
    %c0_8 = arith.constant 0 : index
    %30 = vector.load %arg4[%c0_6, %c0_7, %c0_8] : memref<1x1x16xf32, #tpu.memory_space<vmem>>, vector<1x1x16xf32>
    %31 = vector.shape_cast %30 : vector<1x1x16xf32> to vector<1x16xf32>
    %32 = vector.broadcast %31 : vector<1x16xf32> to vector<32x16xf32>
    %33 = arith.mulf %29, %32 : vector<32x16xf32>
    %34 = arith.truncf %33 : vector<32x16xf32> to vector<32x16xbf16>
    %c0_9 = arith.constant 0 : index
    %c0_10 = arith.constant 0 : index
    %c0_11 = arith.constant 0 : index
    %35 = vector.load %arg7[%c0_9, %c0_10, %c0_11] : memref<1x32x16xbf16, #tpu.memory_space<vmem>>, vector<1x32x16xbf16>
    %36 = vector.shape_cast %35 : vector<1x32x16xbf16> to vector<32x16xbf16>
    %37 = vector.shape_cast %34 : vector<32x16xbf16> to vector<1x32x16xbf16>
    tpu.vector_store %arg7[%c0_9, %c0_10, %c0_11], %37 {strides = array<i32>} : memref<1x32x16xbf16, #tpu.memory_space<vmem>>, vector<1x32x16xbf16>,
    return
  }
  func.func @transform_0(%arg0: i32, %arg1: i32, %arg2: i32) -> (i32, i32, i32) {
    %c0_i32 = arith.constant 0 : i32
    %c0_i32_0 = arith.constant 0 : i32
    return %arg0, %c0_i32, %arg2 : i32, i32, i32
  }
  func.func @transform_1(%arg0: i32, %arg1: i32, %arg2: i32) -> (i32, i32, i32) {
    %c0_i32 = arith.constant 0 : i32
    %c0_i32_0 = arith.constant 0 : i32
    return %arg0, %c0_i32, %arg2 : i32, i32, i32
  }
  func.func @transform_2(%arg0: i32, %arg1: i32, %arg2: i32) -> (i32, i32) {
    %c0_i32 = arith.constant 0 : i32
    %c0_i32_0 = arith.constant 0 : i32
    return %arg1, %c0_i32 : i32, i32
  }
  func.func @transform_3(%arg0: i32, %arg1: i32, %arg2: i32) -> (i32, i32) {
    %c0_i32 = arith.constant 0 : i32
    %c0_i32_0 = arith.constant 0 : i32
    return %arg1, %c0_i32 : i32, i32
  }
  func.func @transform_4(%arg0: i32, %arg1: i32, %arg2: i32) -> (i32, i32, i32) {
    %c0_i32 = arith.constant 0 : i32
    return %arg0, %arg1, %arg2 : i32, i32, i32
  }
}

</mosaic_0001>

<llo_original>
// kernel: tpu_custom_call.1
$region0: #{tpu_custom_call.1}
  #allocation0 [shape = 'u32[]', space=smem, size = 0x4, offset = 0x4, fixed_abs, tag = 'smem constant byte address 0x4 - core index']
  #allocation1 [shape = 'u32[144,128]{1,0:T(1,128)}', space=vmem, size = 0x12000, scoped, tag = 'internal scratch']
  %s0 = inlined_call_operand.vmem [shape: f32[2,4,16], index: 0, kind: input, shape index: {}]
  %s1 = inlined_call_operand.vmem [shape: f32[2,1,16], index: 1, kind: input, shape index: {}]
  %s2 = inlined_call_operand.vmem [shape: bf16[32,4], index: 2, kind: input, shape index: {}]
  %s3 = inlined_call_operand.vmem [shape: f32[32,1], index: 3, kind: input, shape index: {}]
  %s4 = inlined_call_operand.vmem [shape: bf16[2,32,16], index: 4, kind: output, shape index: {}]
  %s5 = sld [smem:[#allocation0]]
  $region49: #{tpu_custom_call.1} parent=0
    _
  %s7 = ssub.s32 1, %s5
  %s8 = scalar_select 0, %s7, %s5
  loop: start=0, step=1, limit=4
  $region2: #{tpu_custom_call.1} parent=0 // loop_pre_header
    _
  $region3: #{tpu_custom_call.1} parent=0 // loop_header
    %s10 = sphi 0, %s14
    %p11 = scmp.ge.s32.totalorder %s10, 4
    %s17 = sphi 0, %s36
    %s18 = sphi 0, %s32
    %s19 = sphi 0, %s28
    %s20 = sphi 0, %s17
    %s21 = sphi 0, %s18
    %s22 = sphi 0, %s19
    %s23 = sphi 0, %s20
    %s24 = sphi 0, %s21
    %s25 = sphi 0, %s22
    %s41 = sphi 0, %s43
    %s44 = sphi 0, %s41
    %s45 = sphi 0, %s44
    %s61 = sphi 0, %s45
    %s69 = sphi 0, %s71
    %s72 = sphi 0, %s69
    %s73 = sphi 0, %s72
    %s89 = sphi 0, %s73
    %s95 = sphi 0, %s97
    %s98 = sphi 0, %s95
    %s99 = sphi 0, %s98
    %s115 = sphi 0, %s99
    %s121 = sphi 0, %s123
    %s124 = sphi 0, %s121
    %s125 = sphi 0, %s124
    %s141 = sphi 0, %s125
    %s151 = sphi 0, %s153
    %s154 = sphi 0, %s151
    %s155 = sphi 0, %s154
    %s171 = sphi 0, %s155
  $region4: #{tpu_custom_call.1} parent=0 // loop_header_branch
    %13 = sbr.rel (%p11) target = $region8
  $region5: #{tpu_custom_call.1} parent=0 // loop_body
    %s15 = ssub.s32 %s10, 1
    %s16 = ssub.s32 %s10, 2
    %s26 = sadd.s32 1, %s19
    %p27 = scmp.ge.s32.totalorder %s26, 1
    %s28 = scalar_select %p27, 0, %s26
    %s29 = sadd.s32 1, %s18
    %s30 = scalar_select %p27, %s29, %s18
    %p31 = scmp.ge.s32.totalorder %s30, 1
    %s32 = scalar_select %p31, 0, %s30
    %s33 = sadd.s32 1, %s17
    %s34 = scalar_select %p31, %s33, %s17
    %p35 = scmp.ge.s32.totalorder %s34, 2
    %s36 = scalar_select %p35, 0, %s34
    %s37 = ssub.s32 %s17, %s36
    %s38 = ssub.s32 %s19, %s28
    %s39 = sor.u32 %s37, %s38
    %p40 = scmp.eq.s32.totalorder %s39, 0
    %s42 = sadd.s32 %s41, 1
    %s43 = scalar_select %p40, %s41, %s42
    %p46 = pneg %p40
    %p47 = scmp.eq.s32.totalorder %s10, 1
    %p48 = por %p46, %p47
    %p49 = scmp.ne.s32.totalorder %s41, %s44
    %p50 = scmp.eq.s32.totalorder %s10, 0
    %p51 = por %p49, %p50
    %p52 = scmp.ne.s32.totalorder %s41, %s44
    %p53 = scmp.eq.s32.totalorder %s15, 1
    %p54 = por %p52, %p53
    %p55 = scmp.ne.s32.totalorder %s44, %s45
    %p56 = scmp.eq.s32.totalorder %s15, 0
    %p57 = por %p55, %p56
    %p58 = scmp.ne.s32.totalorder %s44, %s45
    %p59 = scmp.eq.s32.totalorder %s16, 1
    %p60 = por %p58, %p59
    %p62 = scmp.ne.s32.totalorder %s45, %s61
    %p63 = scmp.eq.s32.totalorder %s16, 0
    %p64 = por %p62, %p63
    %s65 = ssub.s32 %s17, %s36
    %s66 = ssub.s32 %s19, %s28
    %s67 = sor.u32 %s65, %s66
    %p68 = scmp.eq.s32.totalorder %s67, 0
    %s70 = sadd.s32 %s69, 1
    %s71 = scalar_select %p68, %s69, %s70
    %p74 = pneg %p68
    %p75 = scmp.eq.s32.totalorder %s10, 1
    %p76 = por %p74, %p75
    %p77 = scmp.ne.s32.totalorder %s69, %s72
    %p78 = scmp.eq.s32.totalorder %s10, 0
    %p79 = por %p77, %p78
    %p80 = scmp.ne.s32.totalorder %s69, %s72
    %p81 = scmp.eq.s32.totalorder %s15, 1
    %p82 = por %p80, %p81
    %p83 = scmp.ne.s32.totalorder %s72, %s73
    %p84 = scmp.eq.s32.totalorder %s15, 0
    %p85 = por %p83, %p84
    %p86 = scmp.ne.s32.totalorder %s72, %s73
    %p87 = scmp.eq.s32.totalorder %s16, 1
    %p88 = por %p86, %p87
    %p90 = scmp.ne.s32.totalorder %s73, %s89
    %p91 = scmp.eq.s32.totalorder %s16, 0
    %p92 = por %p90, %p91
    %s93 = ssub.s32 %s18, %s32
    %p94 = scmp.eq.s32.totalorder %s93, 0
    %s96 = sadd.s32 %s95, 1
    %s97 = scalar_select %p94, %s95, %s96
    %p100 = pneg %p94
    %p101 = scmp.eq.s32.totalorder %s10, 1
    %p102 = por %p100, %p101
    %p103 = scmp.ne.s32.totalorder %s95, %s98
    %p104 = scmp.eq.s32.totalorder %s10, 0
    %p105 = por %p103, %p104
    %p106 = scmp.ne.s32.totalorder %s95, %s98
    %p107 = scmp.eq.s32.totalorder %s15, 1
    %p108 = por %p106, %p107
    %p109 = scmp.ne.s32.totalorder %s98, %s99
    %p110 = scmp.eq.s32.totalorder %s15, 0
    %p111 = por %p109, %p110
    %p112 = scmp.ne.s32.totalorder %s98, %s99
    %p113 = scmp.eq.s32.totalorder %s16, 1
    %p114 = por %p112, %p113
    %p116 = scmp.ne.s32.totalorder %s99, %s115
    %p117 = scmp.eq.s32.totalorder %s16, 0
    %p118 = por %p116, %p117
    %s119 = ssub.s32 %s18, %s32
    %p120 = scmp.eq.s32.totalorder %s119, 0
    %s122 = sadd.s32 %s121, 1
    %s123 = scalar_select %p120, %s121, %s122
    %p126 = pneg %p120
    %p127 = scmp.eq.s32.totalorder %s10, 1
    %p128 = por %p126, %p127
    %p129 = scmp.ne.s32.totalorder %s121, %s124
    %p130 = scmp.eq.s32.totalorder %s10, 0
    %p131 = por %p129, %p130
    %p132 = scmp.ne.s32.totalorder %s121, %s124
    %p133 = scmp.eq.s32.totalorder %s15, 1
    %p134 = por %p132, %p133
    %p135 = scmp.ne.s32.totalorder %s124, %s125
    %p136 = scmp.eq.s32.totalorder %s15, 0
    %p137 = por %p135, %p136
    %p138 = scmp.ne.s32.totalorder %s124, %s125
    %p139 = scmp.eq.s32.totalorder %s16, 1
    %p140 = por %p138, %p139
    %p142 = scmp.ne.s32.totalorder %s125, %s141
    %p143 = scmp.eq.s32.totalorder %s16, 0
    %p144 = por %p142, %p143
    %s145 = ssub.s32 %s17, %s36
    %s146 = ssub.s32 %s18, %s32
    %s147 = sor.u32 %s145, %s146
    %s148 = ssub.s32 %s19, %s28
    %s149 = sor.u32 %s147, %s148
    %p150 = scmp.eq.s32.totalorder %s149, 0
    %s152 = sadd.s32 %s151, 1
    %s153 = scalar_select %p150, %s151, %s152
    %p156 = pneg %p150
    %p157 = scmp.eq.s32.totalorder %s10, 1
    %p158 = por %p156, %p157
    %p159 = scmp.ne.s32.totalorder %s151, %s154
    %p160 = scmp.eq.s32.totalorder %s10, 0
    %p161 = por %p159, %p160
    %p162 = scmp.ne.s32.totalorder %s151, %s154
    %p163 = scmp.eq.s32.totalorder %s15, 1
    %p164 = por %p162, %p163
    %p165 = scmp.ne.s32.totalorder %s154, %s155
    %p166 = scmp.eq.s32.totalorder %s15, 0
    %p167 = por %p165, %p166
    %p168 = scmp.ne.s32.totalorder %s154, %s155
    %p169 = scmp.eq.s32.totalorder %s16, 1
    %p170 = por %p168, %p169
    %p172 = scmp.ne.s32.totalorder %s155, %s171
    %p173 = scmp.eq.s32.totalorder %s16, 0
    %p174 = por %p172, %p173
    %p175 = scmp.le.s32.totalorder 1, %s10
    %p176 = scmp.lt.s32.totalorder %s10, 3
    %p177 = pnand %p175, %p176
    %p178 = pneg %p177
    // Predicated region
    $region9: #{tpu_custom_call.1} parent=5 // pred_check
      _
    $region10: #{tpu_custom_call.1} parent=5 // pred_check_branch
      %180 = sbr.rel (%p177) target = $region12
    $region11: #{tpu_custom_call.1} parent=5 // pred_region
      %s181 = ssub.s32 %s10, 1
      // Predicated region
      $region13: #{tpu_custom_call.1} parent=11 // pred_check
        %p182 = pneg %p111
      $region14: #{tpu_custom_call.1} parent=11 // pred_check_branch
        %184 = sbr.rel (%p182) target = $region16
      $region15: #{tpu_custom_call.1} parent=11 // pred_region
        %s185 = smul.u32 4, %s21
        %p186 = scmp.lt.s32.totalorder %s185, 3
        %s187 = scalar_select %p186, %s185, 3
        %s188 = smul.addr %s187, 4
        %s189 = scalar_lea.vmem %s2, %s188
        %s190 = smul.u32 4, %s21
      $region16: #{tpu_custom_call.1} parent=11 // pred_fallthru
        _
      // Predicated region
      $region17: #{tpu_custom_call.1} parent=11 // pred_check
        %p191 = pneg %p137
      $region18: #{tpu_custom_call.1} parent=11 // pred_check_branch
        %193 = sbr.rel (%p191) target = $region20
      $region19: #{tpu_custom_call.1} parent=11 // pred_region
        %s194 = smul.u32 4, %s21
        %p195 = scmp.lt.s32.totalorder %s194, 3
        %s196 = scalar_select %p195, %s194, 3
        %s197 = smul.addr %s196, 8
        %s198 = scalar_lea.vmem %s3, %s197
        %s199 = smul.u32 4, %s21
      $region20: #{tpu_custom_call.1} parent=11 // pred_fallthru
        _
    $region12: #{tpu_custom_call.1} parent=5 // pred_fallthru
      _
    %p200 = scmp.lt.s32.totalorder %s10, 2
    // Predicated region
    $region21: #{tpu_custom_call.1} parent=5 // pred_check
      %p201 = pneg %p200
    $region22: #{tpu_custom_call.1} parent=5 // pred_check_branch
      %203 = sbr.rel (%p201) target = $region24
    $region23: #{tpu_custom_call.1} parent=5 // pred_region
      // Predicated region
      $region25: #{tpu_custom_call.1} parent=23 // pred_check
        %p204 = pneg %p51
      $region26: #{tpu_custom_call.1} parent=23 // pred_check_branch
        %206 = sbr.rel (%p204) target = $region28
      $region27: #{tpu_custom_call.1} parent=23 // pred_region
        %p207 = scmp.lt.s32.totalorder %s17, 1
        %s208 = scalar_select %p207, %s17, 1
        %p209 = scmp.lt.s32.totalorder %s19, 0
        %s210 = scalar_select %p209, %s19, 0
        %s211 = sadd.s32 %s210, %s208
        %s212 = smul.addr %s211, 4
        %s213 = scalar_lea.vmem %s0, %s212
      $region28: #{tpu_custom_call.1} parent=23 // pred_fallthru
        _
      // Predicated region
      $region29: #{tpu_custom_call.1} parent=23 // pred_check
        %p214 = pneg %p79
      $region30: #{tpu_custom_call.1} parent=23 // pred_check_branch
        %216 = sbr.rel (%p214) target = $region32
      $region31: #{tpu_custom_call.1} parent=23 // pred_region
        %p217 = scmp.lt.s32.totalorder %s17, 1
        %s218 = scalar_select %p217, %s17, 1
        %p219 = scmp.lt.s32.totalorder %s19, 0
        %s220 = scalar_select %p219, %s19, 0
        %s221 = sadd.s32 %s220, %s218
        %s222 = scalar_lea.vmem %s1, %s221
      $region32: #{tpu_custom_call.1} parent=23 // pred_fallthru
        _
    $region24: #{tpu_custom_call.1} parent=5 // pred_fallthru
      _
    %p223 = scmp.le.s32.totalorder 1, %s10
    %p224 = scmp.lt.s32.totalorder %s10, 3
    %p225 = pnand %p223, %p224
    %p226 = pneg %p225
    // Predicated region
    $region33: #{tpu_custom_call.1} parent=5 // pred_check
      _
    $region34: #{tpu_custom_call.1} parent=5 // pred_check_branch
      %228 = sbr.rel (%p225) target = $region36
    $region35: #{tpu_custom_call.1} parent=5 // pred_region
      %s229 = ssub.s32 %s10, 1
      %p230 = scmp.lt.s32.totalorder %s20, 1
      %s231 = scalar_select %p230, %s20, 1
      %p232 = scmp.lt.s32.totalorder %s22, 0
      %s233 = scalar_select %p232, %s22, 0
      %s234 = sadd.s32 %s233, %s231
      %s235 = smul.addr %s234, 4
      %s236 = scalar_lea.vmem %s0, %s235
      %p237 = pneg %p57
      %p238 = pneg %p54
      %p239 = scmp.lt.s32.totalorder %s20, 1
      %s240 = scalar_select %p239, %s20, 1
      %p241 = scmp.lt.s32.totalorder %s22, 0
      %s242 = scalar_select %p241, %s22, 0
      %s243 = sadd.s32 %s242, %s240
      %s244 = scalar_lea.vmem %s1, %s243
      %p245 = pneg %p85
      %p246 = pneg %p82
      %s247 = smul.u32 4, %s21
      %p248 = scmp.lt.s32.totalorder %s247, 3
      %s249 = scalar_select %p248, %s247, 3
      %s250 = smul.addr %s249, 4
      %s251 = scalar_lea.vmem %s2, %s250
      %p252 = pneg %p111
      %p253 = pneg %p108
      %s254 = smul.u32 4, %s21
      %p255 = scmp.lt.s32.totalorder %s254, 3
      %s256 = scalar_select %p255, %s254, 3
      %s257 = smul.addr %s256, 8
      %s258 = scalar_lea.vmem %s3, %s257
      %p259 = pneg %p137
      %p260 = pneg %p134
      %p261 = pneg %p167
      %p262 = pneg %p164
      %s263 = smul.u32 4, %s21
      %p264 = scmp.lt.s32.totalorder %s20, 1
      %s265 = scalar_select %p264, %s20, 1
      %p266 = scmp.lt.s32.totalorder %s263, 3
      %s267 = scalar_select %p266, %s263, 3
      %p268 = scmp.lt.s32.totalorder %s22, 0
      %s269 = scalar_select %p268, %s22, 0
      %s270 = sadd.s32 %s269, %s267
      %s271 = smul.addr %s265, 4
      %s272 = sadd.s32 %s270, %s271
      %s273 = smul.addr %s272, 4
      %s274 = scalar_lea.vmem %s4, %s273
      %p275 = scmp.lt.s32.totalorder %s20, 1
      %s276 = scalar_select %p275, %s20, 1
      %p277 = scmp.lt.s32.totalorder %s22, 0
      %s278 = scalar_select %p277, %s22, 0
      %s279 = sadd.s32 %s278, %s276
      %s280 = smul.addr %s279, 4
      %s281 = scalar_lea.vmem %s0, %s280
      %p282 = scmp.lt.s32.totalorder %s20, 1
      %s283 = scalar_select %p282, %s20, 1
      %p284 = scmp.lt.s32.totalorder %s22, 0
      %s285 = scalar_select %p284, %s22, 0
      %s286 = sadd.s32 %s285, %s283
      %s287 = scalar_lea.vmem %s1, %s286
      %s288 = smul.u32 4, %s21
      %p289 = scmp.lt.s32.totalorder %s288, 3
      %s290 = scalar_select %p289, %s288, 3
      %s291 = smul.addr %s290, 4
      %s292 = scalar_lea.vmem %s2, %s291
      %s293 = smul.u32 4, %s21
      %s294 = smul.u32 4, %s21
      %p295 = scmp.lt.s32.totalorder %s294, 3
      %s296 = scalar_select %p295, %s294, 3
      %s297 = smul.addr %s296, 8
      %s298 = scalar_lea.vmem %s3, %s297
      %s299 = smul.u32 4, %s21
      %s300 = smul.u32 4, %s21
      %p301 = scmp.lt.s32.totalorder %s20, 1
      %s302 = scalar_select %p301, %s20, 1
      %p303 = scmp.lt.s32.totalorder %s300, 3
      %s304 = scalar_select %p303, %s300, 3
      %p305 = scmp.lt.s32.totalorder %s22, 0
      %s306 = scalar_select %p305, %s22, 0
      %s307 = sadd.s32 %s306, %s304
      %s308 = smul.addr %s302, 4
      %s309 = sadd.s32 %s307, %s308
      %s310 = smul.addr %s309, 4
      %s311 = scalar_lea.vmem %s4, %s310
      %s312 = smul.u32 4, %s21
      %v313 = vld [vmem:[%s281] sm:$0xf]
      %v314 = vld [vmem:[%s292] sm:$0xf]
      %v315 = vld [vmem:[%s292 + $0x4] sm:$0xf]
      %v316 = vld [vmem:[%s292 + $0x8] sm:$0xf]
      %v317 = vld [vmem:[%s292 + $0xc] sm:$0xf]
      %v318 = vunpack.c.l.bf16 %v314
      %v319 = vunpack.c.l.bf16 %v315
      %v320 = vunpack.c.l.bf16 %v316
      %v321 = vunpack.c.l.bf16 %v317
      %323 = vset.pattern.permute.xlu0 0
      %324 = vperm.xlu0 %323, %v318
      %v325 = vpop.permute.xlu0 %324
      %328 = vset.pattern.permute.xlu0 0
      %329 = vperm.xlu0 %328, %v319
      %v330 = vpop.permute.xlu0 %329
      %333 = vset.pattern.permute.xlu0 0
      %334 = vperm.xlu0 %333, %v320
      %v335 = vpop.permute.xlu0 %334
      %338 = vset.pattern.permute.xlu0 0
      %339 = vperm.xlu0 %338, %v321
      %v340 = vpop.permute.xlu0 %339
      %v342 = vlaneseq
      %v343 = vshrl.u32 %v342, 7
      %v344 = vsub.s32 0, %v343
      %v345 = vrot.slane %v313, %v344
      %v346 = vmul.f32 %v325, %v345
      %v347 = vmul.f32 %v330, %v345
      %v348 = vmul.f32 %v335, %v345
      %v349 = vmul.f32 %v340, %v345
      %350 = vset.pattern.permute.xlu0 1
      %351 = vperm.xlu0 %350, %v318
      %v352 = vpop.permute.xlu0 %351
      %354 = vset.pattern.permute.xlu0 1
      %355 = vperm.xlu0 %354, %v319
      %v356 = vpop.permute.xlu0 %355
      %358 = vset.pattern.permute.xlu0 1
      %359 = vperm.xlu0 %358, %v320
      %v360 = vpop.permute.xlu0 %359
      %362 = vset.pattern.permute.xlu0 1
      %363 = vperm.xlu0 %362, %v321
      %v364 = vpop.permute.xlu0 %363
      %v366 = vlaneseq
      %v367 = vshrl.u32 %v366, 7
      %v368 = vsub.s32 1, %v367
      %v369 = vrot.slane %v313, %v368
      %v370 = vmul.f32 %v352, %v369
      %v371 = vmul.f32 %v356, %v369
      %v372 = vmul.f32 %v360, %v369
      %v373 = vmul.f32 %v364, %v369
      %v374 = vadd.f32 %v346, %v370
      %v375 = vadd.f32 %v347, %v371
      %v376 = vadd.f32 %v348, %v372
      %v377 = vadd.f32 %v349, %v373
      %378 = vset.pattern.permute.xlu0 2
      %379 = vperm.xlu0 %378, %v318
      %v380 = vpop.permute.xlu0 %379
      %382 = vset.pattern.permute.xlu0 2
      %383 = vperm.xlu0 %382, %v319
      %v384 = vpop.permute.xlu0 %383
      %386 = vset.pattern.permute.xlu0 2
      %387 = vperm.xlu0 %386, %v320
      %v388 = vpop.permute.xlu0 %387
      %390 = vset.pattern.permute.xlu0 2
      %391 = vperm.xlu0 %390, %v321
      %v392 = vpop.permute.xlu0 %391
      %v394 = vlaneseq
      %v395 = vshrl.u32 %v394, 7
      %v396 = vsub.s32 2, %v395
      %v397 = vrot.slane %v313, %v396
      %v398 = vmul.f32 %v380, %v397
      %v399 = vmul.f32 %v384, %v397
      %v400 = vmul.f32 %v388, %v397
      %v401 = vmul.f32 %v392, %v397
      %v402 = vadd.f32 %v374, %v398
      %v403 = vadd.f32 %v375, %v399
      %v404 = vadd.f32 %v376, %v400
      %v405 = vadd.f32 %v377, %v401
      %406 = vset.pattern.permute.xlu0 3
      %407 = vperm.xlu0 %406, %v318
      %v408 = vpop.permute.xlu0 %407
      %410 = vset.pattern.permute.xlu0 3
      %411 = vperm.xlu0 %410, %v319
      %v412 = vpop.permute.xlu0 %411
      %414 = vset.pattern.permute.xlu0 3
      %415 = vperm.xlu0 %414, %v320
      %v416 = vpop.permute.xlu0 %415
      %418 = vset.pattern.permute.xlu0 3
      %419 = vperm.xlu0 %418, %v321
      %v420 = vpop.permute.xlu0 %419
      %v422 = vlaneseq
      %v423 = vshrl.u32 %v422, 7
      %v424 = vsub.s32 3, %v423
      %v425 = vrot.slane %v313, %v424
      %v426 = vmul.f32 %v408, %v425
      %v427 = vmul.f32 %v412, %v425
      %v428 = vmul.f32 %v416, %v425
      %v429 = vmul.f32 %v420, %v425
      %v430 = vadd.f32 %v402, %v426
      %v431 = vadd.f32 %v403, %v427
      %v432 = vadd.f32 %v404, %v428
      %v433 = vadd.f32 %v405, %v429
      %v434 = vld [vmem:[%s298] sm:$0xff]
      %v435 = vld [vmem:[%s298 + $0x8] sm:$0xff]
      %v436 = vld [vmem:[%s298 + $0x10] sm:$0xff]
      %v437 = vld [vmem:[%s298 + $0x18] sm:$0xff]
      %439 = vset.pattern.permute.xlu0 0
      %440 = vperm.xlu0 %439, %v434
      %v441 = vpop.permute.xlu0 %440
      %444 = vset.pattern.permute.xlu0 0
      %445 = vperm.xlu0 %444, %v435
      %v446 = vpop.permute.xlu0 %445
      %449 = vset.pattern.permute.xlu0 0
      %450 = vperm.xlu0 %449, %v436
      %v451 = vpop.permute.xlu0 %450
      %454 = vset.pattern.permute.xlu0 0
      %455 = vperm.xlu0 %454, %v437
      %v456 = vpop.permute.xlu0 %455
      %v458 = vadd.f32 %v430, %v441
      %v459 = vadd.f32 %v431, %v446
      %v460 = vadd.f32 %v432, %v451
      %v461 = vadd.f32 %v433, %v456
      %v462 = vld [vmem:[%s287] sm:$0x1]
      %v464 = vlaneseq
      %v465 = vshrl.u32 %v464, 7
      %v466 = vsub.s32 0, %v465
      %v467 = vrot.slane %v462, %v466
      %v469 = vmul.f32 %v458, %v467
      %v470 = vmul.f32 %v459, %v467
      %v471 = vmul.f32 %v460, %v467
      %v472 = vmul.f32 %v461, %v467
      %v473 = vpack.c.bf16 %v470, %v469
      %v474 = vpack.c.bf16 %v472, %v471
      %v477 = vunpack.c.l.b16 %v473
      %v478 = vunpack.c.h.b16 %v473
      %v479 = vunpack.c.l.b16 %v474
      %v480 = vunpack.c.h.b16 %v474
      %v481 = vpack.c.b16 %v477, %v477
      %v482 = vpack.c.b16 %v478, %v478
      %v483 = vpack.c.b16 %v479, %v479
      %v484 = vpack.c.b16 %v480, %v480
      %vm489 = vcmask 125952
      %490 = vst.msk [vmem:[%s311] sm:$0xf] %vm489, %v481
      %491 = vst.msk [vmem:[%s311 + $0x4] sm:$0xf] %vm489, %v482
      %492 = vst.msk [vmem:[%s311 + $0x8] sm:$0xf] %vm489, %v483
      %493 = vst.msk [vmem:[%s311 + $0xc] sm:$0xf] %vm489, %v484
      %s494 = smul.u32 4, %s21
      %p495 = scmp.lt.s32.totalorder %s20, 1
      %s496 = scalar_select %p495, %s20, 1
      %p497 = scmp.lt.s32.totalorder %s494, 3
      %s498 = scalar_select %p497, %s494, 3
      %p499 = scmp.lt.s32.totalorder %s22, 0
      %s500 = scalar_select %p499, %s22, 0
      %s501 = sadd.s32 %s500, %s498
      %s502 = smul.addr %s496, 4
      %s503 = sadd.s32 %s501, %s502
      %s504 = smul.addr %s503, 4
      %s505 = scalar_lea.vmem %s4, %s504
      // Predicated region
      $region37: #{tpu_custom_call.1} parent=35 // pred_check
        %p506 = pneg %p164
      $region38: #{tpu_custom_call.1} parent=35 // pred_check_branch
        %508 = sbr.rel (%p506) target = $region40
      $region39: #{tpu_custom_call.1} parent=35 // pred_region
        %s509 = smul.u32 4, %s21
      $region40: #{tpu_custom_call.1} parent=35 // pred_fallthru
        _
    $region36: #{tpu_custom_call.1} parent=5 // pred_fallthru
      _
    %p510 = scmp.le.s32.totalorder 2, %s10
    // Predicated region
    $region41: #{tpu_custom_call.1} parent=5 // pred_check
      %p511 = pneg %p510
    $region42: #{tpu_custom_call.1} parent=5 // pred_check_branch
      %513 = sbr.rel (%p511) target = $region44
    $region43: #{tpu_custom_call.1} parent=5 // pred_region
      %s514 = ssub.s32 %s10, 2
      // Predicated region
      $region45: #{tpu_custom_call.1} parent=43 // pred_check
        %p515 = pneg %p170
      $region46: #{tpu_custom_call.1} parent=43 // pred_check_branch
        %517 = sbr.rel (%p515) target = $region48
      $region47: #{tpu_custom_call.1} parent=43 // pred_region
        %s518 = smul.u32 4, %s24
        %p519 = scmp.lt.s32.totalorder %s23, 1
        %s520 = scalar_select %p519, %s23, 1
        %p521 = scmp.lt.s32.totalorder %s518, 3
        %s522 = scalar_select %p521, %s518, 3
        %p523 = scmp.lt.s32.totalorder %s25, 0
        %s524 = scalar_select %p523, %s25, 0
        %s525 = sadd.s32 %s524, %s522
        %s526 = smul.addr %s520, 4
        %s527 = sadd.s32 %s525, %s526
        %s528 = smul.addr %s527, 4
        %s529 = scalar_lea.vmem %s4, %s528
      $region48: #{tpu_custom_call.1} parent=43 // pred_fallthru
        _
    $region44: #{tpu_custom_call.1} parent=5 // pred_fallthru
      _
  $region6: #{tpu_custom_call.1} parent=0 // loop_footer
    %s14 = sadd.s32 1, %s10
  $region7: #{tpu_custom_call.1} parent=0 // loop_footer_branch
    %9 = sbr.rel target = $region3
  $region8: #{tpu_custom_call.1} parent=0 // loop_exit
    _

</llo_original>
